<compile_context>
chip_gen: v7x
topology: tpu7x:2x2x1
jax: 0.10.0
libtpu: 0.0.40
codegen_flags: <defaults>
</compile_context>

<pallas_src>
import functools

import jax
import jax.numpy as jnp
from jax.experimental import pallas as pl
from jax.experimental.pallas import tpu as pltpu

_EPS = 1e-23  # matches box_embeddings.modules.volume.hard_volume.eps


def _hard_volume_kernel(box_ref, out_ref, *, D: int, log_scale: bool):
    # box_ref: (tb, 2*D) VMEM tile, [:, :D] = z (lower), [:, D:] = Z (upper)
    # out_ref: (tb, 1)
    x = box_ref[...].astype(jnp.float32)      # dense (8,128)-tiled vreg loads
    side = x[:, D:] - x[:, :D]                # Z - z, (tb, D)
    if log_scale:
        res = jnp.sum(jnp.log(jnp.maximum(side, _EPS)), axis=-1, keepdims=True)
    else:
        res = jnp.prod(jnp.maximum(side, 0.0), axis=-1, keepdims=True)
    out_ref[...] = res.astype(out_ref.dtype)


def _pick_tb(B: int, D: int, *, vmem_tile_budget: int = 4 << 20,
             max_rows: int = 2048) -> int:
    """Largest batch tile (multiple of 8) that keeps a single f32 tile under
    `vmem_tile_budget` bytes (double-buffered by Pallas, so 2x that in VMEM:
    well inside the 16 MiB v5e / 32 MiB v6e-v7x default scoped limits)."""
    row_bytes = 2 * D * 4
    cap = max(8, (vmem_tile_budget // row_bytes) // 8 * 8)
    cap = min(cap, max_rows)
    b8 = -(-B // 8) * 8                       # round B up to sublane multiple
    return min(cap, b8)


def hard_volume(box_data: jax.Array, log_scale: bool = True,
                tb: int | None = None) -> jax.Array:
    """box_data: (B, 2, D) -> (B,) hard (ReLU) volumes."""
    B, two, D = box_data.shape
    assert two == 2, "expected packed (B, 2, D) box tensor"

    # Lane-dense layout: (B, 2*D), z in [:, :D], Z in [:, D:].
    box2d = box_data.reshape(B, 2 * D)

    if tb is None:
        tb = _pick_tb(B, D)
    # Ragged B: pad to a tile multiple (zero rows are harmless, sliced off).
    B_pad = -(-B // tb) * tb
    if B_pad != B:
        box2d = jnp.pad(box2d, ((0, B_pad - B), (0, 0)))

    itemsize = jnp.dtype(box_data.dtype).itemsize
    cost = pl.CostEstimate(
        flops=2 * B_pad * D,                              # sub + reduce
        transcendentals=B_pad * D if log_scale else 0,    # log per element
        bytes_accessed=B_pad * 2 * D * itemsize + B_pad * itemsize,
    )

    out = pl.pallas_call(
        functools.partial(_hard_volume_kernel, D=D, log_scale=log_scale),
        out_shape=jax.ShapeDtypeStruct((B_pad, 1), box_data.dtype),
        grid=(B_pad // tb,),
        in_specs=[pl.BlockSpec((tb, 2 * D), lambda i: (i, 0))],
        out_specs=pl.BlockSpec((tb, 1), lambda i: (i, 0)),
        compiler_params=pltpu.CompilerParams(
            dimension_semantics=("parallel",),
        ),
        cost_estimate=cost,
    )(box2d)
    return out[:B, 0]


def _reference(box_data: jax.Array, log_scale: bool) -> jax.Array:
    z = box_data[:, 0, :].astype(jnp.float32)
    Z = box_data[:, 1, :].astype(jnp.float32)
    if log_scale:
        return jnp.sum(jnp.log(jnp.maximum(Z - z, _EPS)), axis=-1)
    return jnp.prod(jnp.maximum(Z - z, 0.0), axis=-1)


if __name__ == "__main__":
    key = jax.random.PRNGKey(0)
    B, D = 13, 128  # B not a multiple of 8 -> exercises ragged padding path

    kz, koff = jax.random.split(key)
    z = jax.random.normal(kz, (B, D), dtype=jnp.float32)
    # Offsets mostly positive, some negative (exercises the ReLU / clamp path).
    off = jax.random.normal(koff, (B, D), dtype=jnp.float32) * 0.5 + 0.75
    Z = z + off
    box_data = jnp.stack([z, Z], axis=1)  # (B, 2, D)

    # log-scale hard volume (default config: log_scale=True)
    vol_log = hard_volume(box_data, log_scale=True)
    jax.block_until_ready(vol_log)
    ref_log = _reference(box_data, log_scale=True)

    # linear-scale hard volume
    vol_lin = hard_volume(box_data, log_scale=False)
    jax.block_until_ready(vol_lin)
    ref_lin = _reference(box_data, log_scale=False)

    assert vol_log.shape == (B,) and vol_lin.shape == (B,)
    assert jnp.allclose(vol_log, ref_log, rtol=1e-5, atol=1e-5)
    assert jnp.allclose(vol_lin, ref_lin, rtol=1e-5, atol=1e-5)

    # bfloat16 input: kernel accumulates in f32 internally, casts at the end.
    box_bf16 = box_data.astype(jnp.bfloat16)
    vol_bf16 = hard_volume(box_bf16, log_scale=True)
    jax.block_until_ready(vol_bf16)
    ref_bf16 = _reference(box_bf16, log_scale=True)
    assert jnp.allclose(vol_bf16.astype(jnp.float32), ref_bf16,
                        rtol=2e-2, atol=2e-2)

    print("KERNEL_OK")
</pallas_src>

<mosaic_0001>
module attributes {stable_mosaic.version = 11 : i64} {
  func.func @_hard_volume_kernel(%arg0: i32, %arg1: memref<16x256xf32, #tpu.memory_space<vmem>>, %arg2: memref<16x1xf32, #tpu.memory_space<vmem>>) attributes {dimension_semantics = [#tpu.dimension_semantics<parallel>], iteration_bounds = array<i64: 1>, scalar_prefetch = 0 : i64, scratch_operands = 0 : i64, tpu.core_type = #tpu.core_type<tc>, window_params = [{transform_indices = @transform_0, window_bounds = array<i64: 16, 256>}, {transform_indices = @transform_1, window_bounds = array<i64: 16, 1>}]} {
    %c0 = arith.constant 0 : index
    %c0_0 = arith.constant 0 : index
    %0 = vector.load %arg1[%c0, %c0_0] : memref<16x256xf32, #tpu.memory_space<vmem>>, vector<16x256xf32>
    %1 = vector.extract_strided_slice %0 {offsets = [0, 128], sizes = [16, 128], strides = [1, 1]} : vector<16x256xf32> to vector<16x128xf32>
    %2 = vector.extract_strided_slice %0 {offsets = [0, 0], sizes = [16, 128], strides = [1, 1]} : vector<16x256xf32> to vector<16x128xf32>
    %3 = arith.subf %1, %2 : vector<16x128xf32>
    %cst = arith.constant 9.99999999E-24 : f32
    %4 = vector.broadcast %cst : f32 to vector<16x128xf32>
    %5 = arith.maximumf %3, %4 : vector<16x128xf32>
    %6 = math.log %5 : vector<16x128xf32>
    %cst_1 = arith.constant dense<0.000000e+00> : vector<16xf32>
    %7 = vector.multi_reduction <add>, %6, %cst_1 [1] : vector<16x128xf32> to vector<16xf32>
    %8 = vector.shape_cast %7 : vector<16xf32> to vector<16x1xf32>
    %c0_2 = arith.constant 0 : index
    %c0_3 = arith.constant 0 : index
    %9 = vector.load %arg2[%c0_2, %c0_3] : memref<16x1xf32, #tpu.memory_space<vmem>>, vector<16x1xf32>
    tpu.vector_store %arg2[%c0_2, %c0_3], %8 {strides = array<i32>} : memref<16x1xf32, #tpu.memory_space<vmem>>, vector<16x1xf32>,
    return
  }
  func.func @transform_0(%arg0: i32) -> (i32, i32) {
    %c0_i32 = arith.constant 0 : i32
    %c0_i32_0 = arith.constant 0 : i32
    return %arg0, %c0_i32 : i32, i32
  }
  func.func @transform_1(%arg0: i32) -> (i32, i32) {
    %c0_i32 = arith.constant 0 : i32
    %c0_i32_0 = arith.constant 0 : i32
    return %arg0, %c0_i32 : i32, i32
  }
}

</mosaic_0001>

<llo_original>
// kernel: tpu_custom_call.1
$region0: #{tpu_custom_call.1}
  #allocation0 [shape = 'u32[]', space=smem, size = 0x4, offset = 0x4, fixed_abs, tag = 'smem constant byte address 0x4 - core index']
  #allocation1 [shape = 'u32[144,128]{1,0:T(1,128)}', space=vmem, size = 0x12000, scoped, tag = 'internal scratch']
  %s0 = inlined_call_operand.hbm [shape: f32[16,256], index: 0, kind: input, shape index: {}]
  %s1 = inlined_call_operand.vmem [shape: f32[16,1], index: 1, kind: output, shape index: {}]
  %s2 = sld [smem:[#allocation0]]
  $region18: #{tpu_custom_call.1} parent=0
    _
  %s4 = ssub.s32 1, %s2
  %s5 = scalar_select 0, %s4, %s2
  $region1: #{tpu_custom_call.1} parent=0
    #allocation2 [shape = 'u8[16384]{0}', space=vmem, size = 0x4000, scoped, tag = 'input window, operand 0, single buffered']
    #allocation3 [shape = 's32[1]{0}', space=sflag, size = 0x4, scoped, tag = 'scoped memory for tpu_custom_call.1']
    %6 = vsyncpa [#allocation3], 0
    // Predicated region
    $region2: #{tpu_custom_call.1} parent=1 // pred_check
      _
    $region3: #{tpu_custom_call.1} parent=1 // pred_check_branch
      %8 = sbr.rel (0) target = $region5
    $region4: #{tpu_custom_call.1} parent=1 // pred_region
      %s10 = ssub.s32 512, 512
      %11 = vsyncadd [#allocation3], %s10
      %s12 = sshll.u32 [#allocation2], 4
      %s13 = int_to_ptr.vmem [resolvable:$true] %s12
      %18 = dma.hbm_to_vmem [thread:$0]  %s0, 512, %s13, [#allocation3], 256, 256, 16
    $region5: #{tpu_custom_call.1} parent=1 // pred_fallthru
      _
    // Predicated region
    $region6: #{tpu_custom_call.1} parent=1 // pred_check
      _
    $region7: #{tpu_custom_call.1} parent=1 // pred_check_branch
      %20 = sbr.rel (0) target = $region9
    $region8: #{tpu_custom_call.1} parent=1 // pred_region
      %21 = dma.done [#allocation3], 512
    $region9: #{tpu_custom_call.1} parent=1 // pred_fallthru
      _
    %v22 = vld [vmem:[#allocation2] sm:$0xff]
    %v23 = vld [vmem:[#allocation2 + $0x8] sm:$0xff]
    %v24 = vld [vmem:[#allocation2 + $0x10] sm:$0xff]
    %v25 = vld [vmem:[#allocation2 + $0x18] sm:$0xff]
    %v26 = vsub.f32 %v23, %v22
    %v27 = vsub.f32 %v25, %v24
    %v28 = vmax.f32 %v26, 1e-23
    %v29 = vmax.f32 %v27, 1e-23
    %v30 = vlog2.pop %v28
    %v31 = vmul.f32 %v30, 0.6931472
    %v32 = vlog2.pop %v29
    %v33 = vmul.f32 %v32, 0.6931472
    %34 = vadd.xlane.f32.xlu0 %v31
    %v35 = vpop.xlane.xlu0 %34
    %36 = vadd.xlane.f32.xlu0 %v33
    %v37 = vpop.xlane.xlu0 %36
    %vm38 = vcmask 7168
    %39 = vst.msk [vmem:[%s1] sm:$0xff] %vm38, %v35
    %40 = vst.msk [vmem:[%s1 + $0x8] sm:$0xff] %vm38, %v37
    // Predicated region
    $region10: #{tpu_custom_call.1} parent=1 // pred_check
      _
    $region11: #{tpu_custom_call.1} parent=1 // pred_check_branch
      %42 = sbr.rel (0) target = $region13
    $region12: #{tpu_custom_call.1} parent=1 // pred_region
      _
    $region13: #{tpu_custom_call.1} parent=1 // pred_fallthru
      _
    // Predicated region
    $region14: #{tpu_custom_call.1} parent=1 // pred_check
      _
    $region15: #{tpu_custom_call.1} parent=1 // pred_check_branch
      %44 = sbr.rel (0) target = $region17
    $region16: #{tpu_custom_call.1} parent=1 // pred_region
      _
    $region17: #{tpu_custom_call.1} parent=1 // pred_fallthru
      _
    %45 = vsyncpa [#allocation3], 1

</llo_original>
